<compile_context>
chip_gen: v6e
topology: v6e:2x2x1
jax: 0.10.0
libtpu: 0.0.40
codegen_flags: <defaults>
</compile_context>

<pallas_src>
import functools

import jax
import jax.numpy as jnp
from jax.experimental import pallas as pl
from jax.experimental.pallas import tpu as pltpu


def _round_up(n, m):
    return ((n + m - 1) // m) * m


def mlp_kernel(x_ref, w1_ref, w2_ref, w3_ref, b_ref, o_ref):
    """One packed-row tile: x_ref (tr, 128) -> o_ref (tr, 16).

    Lane layout per row: 16 samples, sample s holds features in lanes
    [s*8, s*8+8) of x, [s*6, s*6+6) of h1, [s*4, s*4+4) of h2, lane s of out.
    """
    x = x_ref[...]                                                 # (tr, 128)
    b1 = b_ref[0:1, :]                                             # (1, 96)
    b2 = b_ref[1:2, :64]                                           # (1, 64)
    b3 = b_ref[2:3, :16]                                           # (1, 16)

    # Layer 1: block-diag Linear(8->6) + ReLU.
    h1 = jnp.dot(x, w1_ref[...], preferred_element_type=jnp.float32)
    h1 = jnp.maximum(h1 + b1, 0.0)                                 # (tr, 96)
    # Layer 2: block-diag Linear(6->4) + ReLU.
    h2 = jnp.dot(h1, w2_ref[...], preferred_element_type=jnp.float32)
    h2 = jnp.maximum(h2 + b2, 0.0)                                 # (tr, 64)
    # Layer 3: block-diag Linear(4->1) + Sigmoid.
    h3 = jnp.dot(h2, w3_ref[...], preferred_element_type=jnp.float32) + b3
    o_ref[...] = jax.nn.sigmoid(h3)                                # (tr, 16)


@functools.partial(jax.jit, static_argnames=("block_rows",))
def mlp_forward(x, w1, b1, w2, b2, w3, b3, *, block_rows=4096):
    """Forward pass. Parameters use PyTorch layout: w_i is [out, in], b_i is [out]."""
    B = x.shape[0]
    # Packed layout needs the batch to be a multiple of 16 (16 samples/row).
    # For typical batches this is free (pure metadata reshape); otherwise pad a
    # few rows (only case with an extra HBM pass over x).
    B16 = _round_up(B, 16)
    if B16 != B:
        x = jnp.pad(x, ((0, B16 - B), (0, 0)))
    R = B16 // 16
    x_packed = x.reshape(R, 128)                      # zero-copy row-major reshape

    # Block-diagonal weights: 16 copies of W.T on the diagonal.
    eye16 = jnp.eye(16, dtype=jnp.float32)
    w1b = jnp.kron(eye16, w1.T.astype(jnp.float32))   # (128, 96)
    w2b = jnp.kron(eye16, w2.T.astype(jnp.float32))   # (96, 64)
    w3b = jnp.kron(eye16, w3.T.astype(jnp.float32))   # (64, 16)
    bias = jnp.zeros((3, 96), jnp.float32)
    bias = bias.at[0, :96].set(jnp.tile(b1.astype(jnp.float32), 16))
    bias = bias.at[1, :64].set(jnp.tile(b2.astype(jnp.float32), 16))
    bias = bias.at[2, :16].set(jnp.tile(b3.astype(jnp.float32), 16))

    # Row-tile selection: large (MiB-scale per step), sublane-aligned, and at
    # least two grid steps so both v7x TensorCores get work.
    block_rows = _round_up(max(block_rows, 8), 8)
    tr = min(block_rows, _round_up(pl.cdiv(R, 2), 8))
    if tr >= R:
        tr = R                                        # single full-extent block
    grid = pl.cdiv(R, tr)

    out = pl.pallas_call(
        mlp_kernel,
        out_shape=jax.ShapeDtypeStruct((R, 16), jnp.float32),
        grid=(grid,),
        in_specs=[
            pl.BlockSpec((tr, 128), lambda i: (i, 0)),   # packed x: tiled, pipelined
            pl.BlockSpec((128, 96), lambda i: (0, 0)),   # W1 block-diag (VMEM-resident)
            pl.BlockSpec((96, 64), lambda i: (0, 0)),    # W2 block-diag
            pl.BlockSpec((64, 16), lambda i: (0, 0)),    # W3 block-diag
            pl.BlockSpec((3, 96), lambda i: (0, 0)),     # packed biases
        ],
        out_specs=pl.BlockSpec((tr, 16), lambda i: (i, 0)),
        compiler_params=pltpu.CompilerParams(
            dimension_semantics=("parallel",),
            vmem_limit_bytes=32 * 1024 * 1024),
    )(x_packed, w1b, w2b, w3b, bias)

    y = out.reshape(-1)                               # flat order == batch order
    if B16 != B:
        y = y[:B]
    return y.reshape(B, 1)


def init_linear(key, fan_in, fan_out):
    # PyTorch nn.Linear default init: U(-1/sqrt(fan_in), 1/sqrt(fan_in)),
    # weight stored as [out_features, in_features], bias as [out_features].
    kw, kb = jax.random.split(key)
    bound = 1.0 / jnp.sqrt(fan_in)
    w = jax.random.uniform(kw, (fan_out, fan_in), jnp.float32, -bound, bound)
    b = jax.random.uniform(kb, (fan_out,), jnp.float32, -bound, bound)
    return w, b


def reference_forward(x, w1, b1, w2, b2, w3, b3):
    h1 = jnp.maximum(x @ w1.T + b1, 0.0)
    h2 = jnp.maximum(h1 @ w2.T + b2, 0.0)
    return jax.nn.sigmoid(h2 @ w3.T + b3)


if __name__ == "__main__":
    key = jax.random.PRNGKey(0)
    kx, k1, k2, k3, kx2 = jax.random.split(key, 5)

    w1, b1 = init_linear(k1, 8, 6)
    w2, b2 = init_linear(k2, 6, 4)
    w3, b3 = init_linear(k3, 4, 1)

    # Batch multiple of 16: zero-copy packed reshape, 2 grid steps.
    batch = 256
    x = jax.random.normal(kx, (batch, 8), jnp.float32)
    out = jax.block_until_ready(mlp_forward(x, w1, b1, w2, b2, w3, b3))
    ref = reference_forward(x, w1, b1, w2, b2, w3, b3)
    assert out.shape == (batch, 1)
    assert jnp.allclose(out, ref, atol=1e-5, rtol=1e-5)

    # Ragged batch: not a multiple of 16 (small pad path) and a ragged final
    # row tile (masked out-of-bounds output stores on the last grid step).
    batch2 = 300
    x2 = jax.random.normal(kx2, (batch2, 8), jnp.float32)
    out2 = jax.block_until_ready(mlp_forward(x2, w1, b1, w2, b2, w3, b3))
    ref2 = reference_forward(x2, w1, b1, w2, b2, w3, b3)
    assert out2.shape == (batch2, 1)
    assert jnp.allclose(out2, ref2, atol=1e-5, rtol=1e-5)

    print("KERNEL_OK")
</pallas_src>

<mosaic_0001>
module attributes {stable_mosaic.version = 11 : i64} {
  func.func @mlp_kernel(%arg0: i32, %arg1: memref<8x128xf32, #tpu.memory_space<vmem>>, %arg2: memref<128x96xf32, #tpu.memory_space<vmem>>, %arg3: memref<96x64xf32, #tpu.memory_space<vmem>>, %arg4: memref<64x16xf32, #tpu.memory_space<vmem>>, %arg5: memref<3x96xf32, #tpu.memory_space<vmem>>, %arg6: memref<8x16xf32, #tpu.memory_space<vmem>>) attributes {dimension_semantics = [#tpu.dimension_semantics<parallel>], iteration_bounds = array<i64: 2>, scalar_prefetch = 0 : i64, scratch_operands = 0 : i64, tpu.core_type = #tpu.core_type<tc>, window_params = [{transform_indices = @transform_0, window_bounds = array<i64: 8, 128>}, {pipeline_mode = #tpu.pipeline_mode<synchronous>, transform_indices = @transform_1, window_bounds = array<i64: 128, 96>}, {pipeline_mode = #tpu.pipeline_mode<synchronous>, transform_indices = @transform_2, window_bounds = array<i64: 96, 64>}, {pipeline_mode = #tpu.pipeline_mode<synchronous>, transform_indices = @transform_3, window_bounds = array<i64: 64, 16>}, {pipeline_mode = #tpu.pipeline_mode<synchronous>, transform_indices = @transform_4, window_bounds = array<i64: 3, 96>}, {transform_indices = @transform_5, window_bounds = array<i64: 8, 16>}]} {
    %c0 = arith.constant 0 : index
    %c0_0 = arith.constant 0 : index
    %0 = vector.load %arg1[%c0, %c0_0] : memref<8x128xf32, #tpu.memory_space<vmem>>, vector<8x128xf32>
    %c0_1 = arith.constant 0 : index
    %c0_2 = arith.constant 0 : index
    %1 = vector.load %arg5[%c0_1, %c0_2] : memref<3x96xf32, #tpu.memory_space<vmem>>, vector<1x96xf32>
    %c1 = arith.constant 1 : index
    %c0_3 = arith.constant 0 : index
    %2 = vector.load %arg5[%c1, %c0_3] : memref<3x96xf32, #tpu.memory_space<vmem>>, vector<1x64xf32>
    %c2 = arith.constant 2 : index
    %c0_4 = arith.constant 0 : index
    %3 = vector.load %arg5[%c2, %c0_4] : memref<3x96xf32, #tpu.memory_space<vmem>>, vector<1x16xf32>
    %c0_5 = arith.constant 0 : index
    %c0_6 = arith.constant 0 : index
    %4 = vector.load %arg2[%c0_5, %c0_6] : memref<128x96xf32, #tpu.memory_space<vmem>>, vector<128x96xf32>
    %cst = arith.constant dense<0.000000e+00> : vector<8x96xf32>
    %5 = tpu.matmul %0, %4, %cst {dimension_numbers = #tpu.dot_dimension_numbers<[1], [0], [0], [1], [0, 0, 1, 1], [], []>} : vector<8x128xf32>, vector<128x96xf32>, vector<8x96xf32> -> vector<8x96xf32>
    %6 = vector.broadcast %1 : vector<1x96xf32> to vector<8x96xf32>
    %7 = arith.addf %5, %6 : vector<8x96xf32>
    %cst_7 = arith.constant 0.000000e+00 : f32
    %8 = vector.broadcast %cst_7 : f32 to vector<8x96xf32>
    %9 = arith.maximumf %7, %8 : vector<8x96xf32>
    %c0_8 = arith.constant 0 : index
    %c0_9 = arith.constant 0 : index
    %10 = vector.load %arg3[%c0_8, %c0_9] : memref<96x64xf32, #tpu.memory_space<vmem>>, vector<96x64xf32>
    %cst_10 = arith.constant dense<0.000000e+00> : vector<8x64xf32>
    %11 = tpu.matmul %9, %10, %cst_10 {dimension_numbers = #tpu.dot_dimension_numbers<[1], [0], [0], [1], [0, 0, 1, 1], [], []>} : vector<8x96xf32>, vector<96x64xf32>, vector<8x64xf32> -> vector<8x64xf32>
    %12 = vector.broadcast %2 : vector<1x64xf32> to vector<8x64xf32>
    %13 = arith.addf %11, %12 : vector<8x64xf32>
    %cst_11 = arith.constant 0.000000e+00 : f32
    %14 = vector.broadcast %cst_11 : f32 to vector<8x64xf32>
    %15 = arith.maximumf %13, %14 : vector<8x64xf32>
    %c0_12 = arith.constant 0 : index
    %c0_13 = arith.constant 0 : index
    %16 = vector.load %arg4[%c0_12, %c0_13] : memref<64x16xf32, #tpu.memory_space<vmem>>, vector<64x16xf32>
    %cst_14 = arith.constant dense<0.000000e+00> : vector<8x16xf32>
    %17 = tpu.matmul %15, %16, %cst_14 {dimension_numbers = #tpu.dot_dimension_numbers<[1], [0], [0], [1], [0, 0, 1, 1], [], []>} : vector<8x64xf32>, vector<64x16xf32>, vector<8x16xf32> -> vector<8x16xf32>
    %18 = vector.broadcast %3 : vector<1x16xf32> to vector<8x16xf32>
    %19 = arith.addf %17, %18 : vector<8x16xf32>
    %20 = arith.negf %19 : vector<8x16xf32>
    %21 = math.exp %20 : vector<8x16xf32>
    %cst_15 = arith.constant 1.000000e+00 : f32
    %22 = vector.broadcast %cst_15 : f32 to vector<8x16xf32>
    %23 = arith.addf %22, %21 : vector<8x16xf32>
    %24 = arith.divf %22, %23 : vector<8x16xf32>
    %c0_16 = arith.constant 0 : index
    %c0_17 = arith.constant 0 : index
    %25 = vector.load %arg6[%c0_16, %c0_17] : memref<8x16xf32, #tpu.memory_space<vmem>>, vector<8x16xf32>
    tpu.vector_store %arg6[%c0_16, %c0_17], %24 {strides = array<i32>} : memref<8x16xf32, #tpu.memory_space<vmem>>, vector<8x16xf32>,
    return
  }
  func.func @transform_0(%arg0: i32) -> (i32, i32) {
    %c0_i32 = arith.constant 0 : i32
    %c0_i32_0 = arith.constant 0 : i32
    return %arg0, %c0_i32 : i32, i32
  }
  func.func @transform_1(%arg0: i32) -> (i32, i32) {
    %c0_i32 = arith.constant 0 : i32
    %c0_i32_0 = arith.constant 0 : i32
    %c0_i32_1 = arith.constant 0 : i32
    return %c0_i32, %c0_i32_0 : i32, i32
  }
  func.func @transform_2(%arg0: i32) -> (i32, i32) {
    %c0_i32 = arith.constant 0 : i32
    %c0_i32_0 = arith.constant 0 : i32
    %c0_i32_1 = arith.constant 0 : i32
    return %c0_i32, %c0_i32_0 : i32, i32
  }
  func.func @transform_3(%arg0: i32) -> (i32, i32) {
    %c0_i32 = arith.constant 0 : i32
    %c0_i32_0 = arith.constant 0 : i32
    %c0_i32_1 = arith.constant 0 : i32
    return %c0_i32, %c0_i32_0 : i32, i32
  }
  func.func @transform_4(%arg0: i32) -> (i32, i32) {
    %c0_i32 = arith.constant 0 : i32
    %c0_i32_0 = arith.constant 0 : i32
    %c0_i32_1 = arith.constant 0 : i32
    return %c0_i32, %c0_i32_0 : i32, i32
  }
  func.func @transform_5(%arg0: i32) -> (i32, i32) {
    %c0_i32 = arith.constant 0 : i32
    %c0_i32_0 = arith.constant 0 : i32
    return %arg0, %c0_i32 : i32, i32
  }
}

</mosaic_0001>

<llo_original>
// kernel: tile.18
$region0: #{tile.18}
  #allocation0 [shape = 's32[1]{0}', space=sflag, size = 0x4, scoped, tag = 'scoped memory for tile.18']
  %s0 = inlined_call_operand.vmem [shape: f32[6], index: 0, kind: input, shape index: {}]
  %s1 = inlined_call_operand.vmem [shape: f32[16,6], index: 1, kind: output, shape index: {}]
  // Predicated region
  $region2: #{tile.18} parent=0 // pred_check
    _
  $region3: #{tile.18} parent=0 // pred_check_branch
    %3 = sbr.rel (0) target = $region5
  $region4: #{tile.18} parent=0 // pred_region
    _
  $region5: #{tile.18} parent=0 // pred_fallthru
    _
  %v4 = vld [vmem:[%s0] ss:$0 sm:$0xff]
  %5 = vst [vmem:[%s1] sm:$0xff] %v4
  %s6 = scalar_lea.vmem %s1, 8
  %7 = vst [vmem:[%s6] sm:$0xff] %v4

// kernel: mlp_forward.1
$region0: #{mlp_forward.1}
  #allocation0 [shape = 'u32[]', space=smem, size = 0x4, offset = 0x4, fixed_abs, tag = 'smem constant byte address 0x4 - core index']
  #allocation1 [shape = 'u32[144,128]{1,0:T(1,128)}', space=vmem, size = 0x12000, scoped, tag = 'internal scratch']
  %s0 = inlined_call_operand.vmem [shape: f32[16,128], index: 0, kind: input, shape index: {}]
  %s1 = inlined_call_operand.vmem [shape: f32[128,96], index: 1, kind: input, shape index: {}]
  %s2 = inlined_call_operand.vmem [shape: f32[96,64], index: 2, kind: input, shape index: {}]
  %s3 = inlined_call_operand.vmem [shape: f32[64,16], index: 3, kind: input, shape index: {}]
  %s4 = inlined_call_operand.vmem [shape: f32[3,96], index: 4, kind: input, shape index: {}]
  %s5 = inlined_call_operand.vmem [shape: f32[16,16], index: 5, kind: output, shape index: {}]
  %s6 = sld [smem:[#allocation0]]
  $region53: #{mlp_forward.1} parent=0
    _
  %s8 = ssub.s32 1, %s6
  %s9 = scalar_select 0, %s8, %s6
  loop: start=0, step=1, limit=4
  $region2: #{mlp_forward.1} parent=0 // loop_pre_header
    _
  $region3: #{mlp_forward.1} parent=0 // loop_header
    %s11 = sphi 0, %s15
    %p12 = scmp.ge.s32.totalorder %s11, 4
    %s21 = sphi 0, %s23
    %s24 = sphi 0, %s21
    %s25 = sphi 0, %s24
    %s41 = sphi 0, %s25
    %s45 = sphi 0, %s45
    %s47 = sphi 0, %s45
    %s48 = sphi 0, %s47
    %s62 = sphi 0, %s48
    %s66 = sphi 0, %s66
    %s68 = sphi 0, %s66
    %s69 = sphi 0, %s68
    %s83 = sphi 0, %s69
    %s87 = sphi 0, %s87
    %s89 = sphi 0, %s87
    %s90 = sphi 0, %s89
    %s104 = sphi 0, %s90
    %s108 = sphi 0, %s108
    %s110 = sphi 0, %s108
    %s111 = sphi 0, %s110
    %s125 = sphi 0, %s111
    %s131 = sphi 0, %s133
    %s134 = sphi 0, %s131
    %s135 = sphi 0, %s134
    %s151 = sphi 0, %s135
  $region4: #{mlp_forward.1} parent=0 // loop_header_branch
    %14 = sbr.rel (%p12) target = $region8
  $region5: #{mlp_forward.1} parent=0 // loop_body
    %s16 = ssub.s32 %s11, 1
    %s17 = ssub.s32 %s11, 2
    %s18 = sadd.s32 %s11, 1
    %s19 = ssub.s32 %s11, %s18
    %p20 = scmp.eq.s32.totalorder %s19, 0
    %s22 = sadd.s32 %s21, 1
    %s23 = scalar_select %p20, %s21, %s22
    %p26 = pneg %p20
    %p27 = scmp.eq.s32.totalorder %s11, 1
    %p28 = por %p26, %p27
    %p29 = scmp.ne.s32.totalorder %s21, %s24
    %p30 = scmp.eq.s32.totalorder %s11, 0
    %p31 = por %p29, %p30
    %p32 = scmp.ne.s32.totalorder %s21, %s24
    %p33 = scmp.eq.s32.totalorder %s16, 1
    %p34 = por %p32, %p33
    %p35 = scmp.ne.s32.totalorder %s24, %s25
    %p36 = scmp.eq.s32.totalorder %s16, 0
    %p37 = por %p35, %p36
    %p38 = scmp.ne.s32.totalorder %s24, %s25
    %p39 = scmp.eq.s32.totalorder %s17, 1
    %p40 = por %p38, %p39
    %p42 = scmp.ne.s32.totalorder %s25, %s41
    %p43 = scmp.eq.s32.totalorder %s17, 0
    %p44 = por %p42, %p43
    %s46 = sadd.s32 %s45, 1
    %p49 = scmp.eq.s32.totalorder %s11, 1
    %p50 = scmp.ne.s32.totalorder %s45, %s47
    %p51 = scmp.eq.s32.totalorder %s11, 0
    %p52 = por %p50, %p51
    %p53 = scmp.ne.s32.totalorder %s45, %s47
    %p54 = scmp.eq.s32.totalorder %s16, 1
    %p55 = por %p53, %p54
    %p56 = scmp.ne.s32.totalorder %s47, %s48
    %p57 = scmp.eq.s32.totalorder %s16, 0
    %p58 = por %p56, %p57
    %p59 = scmp.ne.s32.totalorder %s47, %s48
    %p60 = scmp.eq.s32.totalorder %s17, 1
    %p61 = por %p59, %p60
    %p63 = scmp.ne.s32.totalorder %s48, %s62
    %p64 = scmp.eq.s32.totalorder %s17, 0
    %p65 = por %p63, %p64
    %s67 = sadd.s32 %s66, 1
    %p70 = scmp.eq.s32.totalorder %s11, 1
    %p71 = scmp.ne.s32.totalorder %s66, %s68
    %p72 = scmp.eq.s32.totalorder %s11, 0
    %p73 = por %p71, %p72
    %p74 = scmp.ne.s32.totalorder %s66, %s68
    %p75 = scmp.eq.s32.totalorder %s16, 1
    %p76 = por %p74, %p75
    %p77 = scmp.ne.s32.totalorder %s68, %s69
    %p78 = scmp.eq.s32.totalorder %s16, 0
    %p79 = por %p77, %p78
    %p80 = scmp.ne.s32.totalorder %s68, %s69
    %p81 = scmp.eq.s32.totalorder %s17, 1
    %p82 = por %p80, %p81
    %p84 = scmp.ne.s32.totalorder %s69, %s83
    %p85 = scmp.eq.s32.totalorder %s17, 0
    %p86 = por %p84, %p85
    %s88 = sadd.s32 %s87, 1
    %p91 = scmp.eq.s32.totalorder %s11, 1
    %p92 = scmp.ne.s32.totalorder %s87, %s89
    %p93 = scmp.eq.s32.totalorder %s11, 0
    %p94 = por %p92, %p93
    %p95 = scmp.ne.s32.totalorder %s87, %s89
    %p96 = scmp.eq.s32.totalorder %s16, 1
    %p97 = por %p95, %p96
    %p98 = scmp.ne.s32.totalorder %s89, %s90
    %p99 = scmp.eq.s32.totalorder %s16, 0
    %p100 = por %p98, %p99
    %p101 = scmp.ne.s32.totalorder %s89, %s90
    %p102 = scmp.eq.s32.totalorder %s17, 1
    %p103 = por %p101, %p102
    %p105 = scmp.ne.s32.totalorder %s90, %s104
    %p106 = scmp.eq.s32.totalorder %s17, 0
    %p107 = por %p105, %p106
    %s109 = sadd.s32 %s108, 1
    %p112 = scmp.eq.s32.totalorder %s11, 1
    %p113 = scmp.ne.s32.totalorder %s108, %s110
    %p114 = scmp.eq.s32.totalorder %s11, 0
    %p115 = por %p113, %p114
    %p116 = scmp.ne.s32.totalorder %s108, %s110
    %p117 = scmp.eq.s32.totalorder %s16, 1
    %p118 = por %p116, %p117
    %p119 = scmp.ne.s32.totalorder %s110, %s111
    %p120 = scmp.eq.s32.totalorder %s16, 0
    %p121 = por %p119, %p120
    %p122 = scmp.ne.s32.totalorder %s110, %s111
    %p123 = scmp.eq.s32.totalorder %s17, 1
    %p124 = por %p122, %p123
    %p126 = scmp.ne.s32.totalorder %s111, %s125
    %p127 = scmp.eq.s32.totalorder %s17, 0
    %p128 = por %p126, %p127
    %s129 = ssub.s32 %s11, %s18
    %p130 = scmp.eq.s32.totalorder %s129, 0
    %s132 = sadd.s32 %s131, 1
    %s133 = scalar_select %p130, %s131, %s132
    %p136 = pneg %p130
    %p137 = scmp.eq.s32.totalorder %s11, 1
    %p138 = por %p136, %p137
    %p139 = scmp.ne.s32.totalorder %s131, %s134
    %p140 = scmp.eq.s32.totalorder %s11, 0
    %p141 = por %p139, %p140
    %p142 = scmp.ne.s32.totalorder %s131, %s134
    %p143 = scmp.eq.s32.totalorder %s16, 1
    %p144 = por %p142, %p143
    %p145 = scmp.ne.s32.totalorder %s134, %s135
    %p146 = scmp.eq.s32.totalorder %s16, 0
    %p147 = por %p145, %p146
    %p148 = scmp.ne.s32.totalorder %s134, %s135
    %p149 = scmp.eq.s32.totalorder %s17, 1
    %p150 = por %p148, %p149
    %p152 = scmp.ne.s32.totalorder %s135, %s151
    %p153 = scmp.eq.s32.totalorder %s17, 0
    %p154 = por %p152, %p153
    %p155 = scmp.le.s32.totalorder 1, %s11
    %p156 = scmp.lt.s32.totalorder %s11, 3
    %p157 = pnand %p155, %p156
    %p158 = pneg %p157
    // Predicated region
    $region9: #{mlp_forward.1} parent=5 // pred_check
      _
    $region10: #{mlp_forward.1} parent=5 // pred_check_branch
      %160 = sbr.rel (%p157) target = $region12
    $region11: #{mlp_forward.1} parent=5 // pred_region
      %s161 = ssub.s32 %s11, 1
      // Predicated region
      $region13: #{mlp_forward.1} parent=11 // pred_check
        %p162 = pneg %p58
      $region14: #{mlp_forward.1} parent=11 // pred_check_branch
        %164 = sbr.rel (%p162) target = $region16
      $region15: #{mlp_forward.1} parent=11 // pred_region
        _
      $region16: #{mlp_forward.1} parent=11 // pred_fallthru
        _
      // Predicated region
      $region17: #{mlp_forward.1} parent=11 // pred_check
        %p165 = pneg %p79
      $region18: #{mlp_forward.1} parent=11 // pred_check_branch
        %167 = sbr.rel (%p165) target = $region20
      $region19: #{mlp_forward.1} parent=11 // pred_region
        _
      $region20: #{mlp_forward.1} parent=11 // pred_fallthru
        _
      // Predicated region
      $region21: #{mlp_forward.1} parent=11 // pred_check
        %p168 = pneg %p100
      $region22: #{mlp_forward.1} parent=11 // pred_check_branch
        %170 = sbr.rel (%p168) target = $region24
      $region23: #{mlp_forward.1} parent=11 // pred_region
        _
      $region24: #{mlp_forward.1} parent=11 // pred_fallthru
        _
      // Predicated region
      $region25: #{mlp_forward.1} parent=11 // pred_check
        %p171 = pneg %p121
      $region26: #{mlp_forward.1} parent=11 // pred_check_branch
        %173 = sbr.rel (%p171) target = $region28
      $region27: #{mlp_forward.1} parent=11 // pred_region
        _
      $region28: #{mlp_forward.1} parent=11 // pred_fallthru
        _
    $region12: #{mlp_forward.1} parent=5 // pred_fallthru
      _
    %p174 = scmp.lt.s32.totalorder %s11, 2
    // Predicated region
    $region29: #{mlp_forward.1} parent=5 // pred_check
      %p175 = pneg %p174
    $region30: #{mlp_forward.1} parent=5 // pred_check_branch
      %177 = sbr.rel (%p175) target = $region32
    $region31: #{mlp_forward.1} parent=5 // pred_region
      // Predicated region
      $region33: #{mlp_forward.1} parent=31 // pred_check
        %p178 = pneg %p31
      $region34: #{mlp_forward.1} parent=31 // pred_check_branch
        %180 = sbr.rel (%p178) target = $region36
      $region35: #{mlp_forward.1} parent=31 // pred_region
        %p181 = scmp.lt.s32.totalorder %s11, 1
        %s182 = scalar_select %p181, %s11, 1
        %s183 = smul.addr %s182, 8
        %s184 = scalar_lea.vmem %s0, %s183
      $region36: #{mlp_forward.1} parent=31 // pred_fallthru
        _
    $region32: #{mlp_forward.1} parent=5 // pred_fallthru
      _
    %p185 = scmp.le.s32.totalorder 1, %s11
    %p186 = scmp.lt.s32.totalorder %s11, 3
    %p187 = pnand %p185, %p186
    %p188 = pneg %p187
    // Predicated region
    $region37: #{mlp_forward.1} parent=5 // pred_check
      _
    $region38: #{mlp_forward.1} parent=5 // pred_check_branch
      %190 = sbr.rel (%p187) target = $region40
    $region39: #{mlp_forward.1} parent=5 // pred_region
      %s191 = ssub.s32 %s11, 1
      %p192 = scmp.lt.s32.totalorder %s16, 1
      %s193 = scalar_select %p192, %s16, 1
      %s194 = smul.addr %s193, 8
      %s195 = scalar_lea.vmem %s0, %s194
      %p196 = pneg %p37
      %p197 = pneg %p34
      %p198 = pneg %p58
      %p199 = pneg %p55
      %p200 = pneg %p79
      %p201 = pneg %p76
      %p202 = pneg %p100
      %p203 = pneg %p97
      %p204 = pneg %p121
      %p205 = pneg %p118
      %p206 = pneg %p147
      %p207 = pneg %p144
      %p208 = scmp.lt.s32.totalorder %s16, 1
      %s209 = scalar_select %p208, %s16, 1
      %s210 = smul.addr %s209, 8
      %s211 = scalar_lea.vmem %s5, %s210
      %p212 = scmp.lt.s32.totalorder %s16, 1
      %s213 = scalar_select %p212, %s16, 1
      %s214 = smul.addr %s213, 8
      %s215 = scalar_lea.vmem %s0, %s214
      %p216 = scmp.lt.s32.totalorder %s16, 1
      %s217 = scalar_select %p216, %s16, 1
      %s218 = smul.addr %s217, 8
      %s219 = scalar_lea.vmem %s5, %s218
      %v220 = vld [vmem:[%s215] sm:$0xff]
      %v221 = vld [vmem:[%s4] sm:$0x1]
      %v222 = vld [vmem:[%s4 + $0x1] sm:$0x1]
      %v223 = vld [vmem:[%s4 + $0x2] sm:$0x1]
      %v224 = vld [vmem:[%s1] sm:$0xff]
      %v225 = vld [vmem:[%s1 + $0x8] sm:$0xff]
      %v226 = vld [vmem:[%s1 + $0x10] sm:$0xff]
      %v227 = vld [vmem:[%s1 + $0x18] sm:$0xff]
      %v228 = vld [vmem:[%s1 + $0x20] sm:$0xff]
      %v229 = vld [vmem:[%s1 + $0x28] sm:$0xff]
      %v230 = vld [vmem:[%s1 + $0x30] sm:$0xff]
      %v231 = vld [vmem:[%s1 + $0x38] sm:$0xff]
      %v232 = vld [vmem:[%s1 + $0x40] sm:$0xff]
      %v233 = vld [vmem:[%s1 + $0x48] sm:$0xff]
      %v234 = vld [vmem:[%s1 + $0x50] sm:$0xff]
      %v235 = vld [vmem:[%s1 + $0x58] sm:$0xff]
      %v236 = vld [vmem:[%s1 + $0x60] sm:$0xff]
      %v237 = vld [vmem:[%s1 + $0x68] sm:$0xff]
      %v238 = vld [vmem:[%s1 + $0x70] sm:$0xff]
      %v239 = vld [vmem:[%s1 + $0x78] sm:$0xff]
      %v240 = vlaneseq
      %v241 = vshrl.u32 %v240, 7
      %v242 = vsub.s32 0, %v241
      %v243 = vrot.slane %v221, %v242
      %244 = vmatprep.subr.mxu0 0.0
      %245 = vmatpush1.msra.mxu0 %v239
      %246 = vmatprep.subr.mxu0 0.0
      %247 = vmatpush1.msra.mxu0 %v238
      %248 = vmatprep.subr.mxu0 0.0
      %249 = vmatpush1.msra.mxu0 %v237
      %250 = vmatprep.subr.mxu0 0.0
      %251 = vmatpush1.msra.mxu0 %v236
      %252 = vmatprep.subr.mxu0 0.0
      %253 = vmatpush1.msra.mxu0 %v235
      %254 = vmatprep.subr.mxu0 0.0
      %255 = vmatpush1.msra.mxu0 %v234
      %256 = vmatprep.subr.mxu0 0.0
      %257 = vmatpush1.msra.mxu0 %v233
      %258 = vmatprep.subr.mxu0 0.0
      %259 = vmatpush1.msra.mxu0 %v232
      %260 = vmatprep.subr.mxu0 0.0
      %261 = vmatpush1.msra.mxu0 %v231
      %262 = vmatprep.subr.mxu0 0.0
      %263 = vmatpush1.msra.mxu0 %v230
      %264 = vmatprep.subr.mxu0 0.0
      %265 = vmatpush1.msra.mxu0 %v229
      %266 = vmatprep.subr.mxu0 0.0
      %267 = vmatpush1.msra.mxu0 %v228
      %268 = vmatprep.subr.mxu0 0.0
      %269 = vmatpush1.msra.mxu0 %v227
      %270 = vmatprep.subr.mxu0 0.0
      %271 = vmatpush1.msra.mxu0 %v226
      %272 = vmatprep.subr.mxu0 0.0
      %273 = vmatpush1.msra.mxu0 %v225
      %274 = vmatprep.subr.mxu0 0.0
      %275 = vmatpush1.msra.mxu0 %v224
      %276 = vmatprep.subr.mxu0 0.0
      %277 = vmatpush2.msra.mxu0 0.0
      %278 = vmatprep.subr.mxu0 0.0
      %279 = vmatpush2.msra.mxu0 0.0
      %280 = vmatprep.subr.mxu0 0.0
      %281 = vmatpush2.msra.mxu0 0.0
      %282 = vmatprep.subr.mxu0 0.0
      %283 = vmatpush2.msra.mxu0 0.0
      %284 = vmatprep.subr.mxu0 0.0
      %285 = vmatpush2.msra.mxu0 0.0
      %286 = vmatprep.subr.mxu0 0.0
      %287 = vmatpush2.msra.mxu0 0.0
      %288 = vmatprep.subr.mxu0 0.0
      %289 = vmatpush2.msra.mxu0 0.0
      %290 = vmatprep.subr.mxu0 0.0
      %291 = vmatpush2.msra.mxu0 0.0
      %292 = vmatprep.subr.mxu0 0.0
      %293 = vmatpush2.msra.mxu0 0.0
      %294 = vmatprep.subr.mxu0 0.0
      %295 = vmatpush2.msra.mxu0 0.0
      %296 = vmatprep.subr.mxu0 0.0
      %297 = vmatpush2.msra.mxu0 0.0
      %298 = vmatprep.subr.mxu0 0.0
      %299 = vmatpush2.msra.mxu0 0.0
      %300 = vmatprep.subr.mxu0 0.0
      %301 = vmatpush2.msra.mxu0 0.0
      %302 = vmatprep.subr.mxu0 0.0
      %303 = vmatpush2.msra.mxu0 0.0
      %304 = vmatprep.subr.mxu0 0.0
      %305 = vmatpush2.msra.mxu0 0.0
      %306 = vmatprep.subr.mxu0 0.0
      %307 = vmatpush2.msra.mxu0 0.0
      %308 = vmatprep.mubr.f32.mxu0 0.0
      %309 = vmatmul.mubr.f32.gmra.mxu0 %v220
      %v310 = vpop.f32.mrf.mxu0
      %v311 = vadd.f32 %v243, %v310
      %v312 = vpop.f32.mrf.mxu0
      %313 = vdwg.mxu0
      %v314 = vmax.f32 %v311, 0.0
      %v315 = vld [vmem:[%s2] sm:$0xff]
      %v316 = vld [vmem:[%s2 + $0x8] sm:$0xff]
      %v317 = vld [vmem:[%s2 + $0x10] sm:$0xff]
      %v318 = vld [vmem:[%s2 + $0x18] sm:$0xff]
      %v319 = vld [vmem:[%s2 + $0x20] sm:$0xff]
      %v320 = vld [vmem:[%s2 + $0x28] sm:$0xff]
      %v321 = vld [vmem:[%s2 + $0x30] sm:$0xff]
      %v322 = vld [vmem:[%s2 + $0x38] sm:$0xff]
      %v323 = vld [vmem:[%s2 + $0x40] sm:$0xff]
      %v324 = vld [vmem:[%s2 + $0x48] sm:$0xff]
      %v325 = vld [vmem:[%s2 + $0x50] sm:$0xff]
      %v326 = vld [vmem:[%s2 + $0x58] sm:$0xff]
      %v327 = vlaneseq
      %v328 = vshrl.u32 %v327, 7
      %v329 = vsub.s32 0, %v328
      %v330 = vrot.slane %v222, %v329
      %vm331 = vcmask 785408
      %v333 = vsel %vm331, %v314, 0
      %335 = vmatprep.subr.mxu0 0.0
      %336 = vmatpush1.msra.mxu0 0.0
      %337 = vmatprep.subr.mxu0 0.0
      %338 = vmatpush1.msra.mxu0 0.0
      %339 = vmatprep.subr.mxu0 0.0
      %340 = vmatpush1.msra.mxu0 0.0
      %341 = vmatprep.subr.mxu0 0.0
      %342 = vmatpush1.msra.mxu0 0.0
      %343 = vmatprep.subr.mxu0 0.0
      %344 = vmatpush1.msra.mxu0 %v326
      %345 = vmatprep.subr.mxu0 0.0
      %346 = vmatpush1.msra.mxu0 %v325
      %347 = vmatprep.subr.mxu0 0.0
      %348 = vmatpush1.msra.mxu0 %v324
      %349 = vmatprep.subr.mxu0 0.0
      %350 = vmatpush1.msra.mxu0 %v323
      %351 = vmatprep.subr.mxu0 0.0
      %352 = vmatpush1.msra.mxu0 %v322
      %353 = vmatprep.subr.mxu0 0.0
      %354 = vmatpush1.msra.mxu0 %v321
      %355 = vmatprep.subr.mxu0 0.0
      %356 = vmatpush1.msra.mxu0 %v320
      %357 = vmatprep.subr.mxu0 0.0
      %358 = vmatpush1.msra.mxu0 %v319
      %359 = vmatprep.subr.mxu0 0.0
      %360 = vmatpush1.msra.mxu0 %v318
      %361 = vmatprep.subr.mxu0 0.0
      %362 = vmatpush1.msra.mxu0 %v317
      %363 = vmatprep.subr.mxu0 0.0
      %364 = vmatpush1.msra.mxu0 %v316
      %365 = vmatprep.subr.mxu0 0.0
      %366 = vmatpush1.msra.mxu0 %v315
      %367 = vmatprep.subr.mxu0 0.0
      %368 = vmatpush2.msra.mxu0 0.0
      %369 = vmatprep.subr.mxu0 0.0
      %370 = vmatpush2.msra.mxu0 0.0
      %371 = vmatprep.subr.mxu0 0.0
      %372 = vmatpush2.msra.mxu0 0.0
      %373 = vmatprep.subr.mxu0 0.0
      %374 = vmatpush2.msra.mxu0 0.0
      %375 = vmatprep.subr.mxu0 0.0
      %376 = vmatpush2.msra.mxu0 0.0
      %377 = vmatprep.subr.mxu0 0.0
      %378 = vmatpush2.msra.mxu0 0.0
      %379 = vmatprep.subr.mxu0 0.0
      %380 = vmatpush2.msra.mxu0 0.0
      %381 = vmatprep.subr.mxu0 0.0
      %382 = vmatpush2.msra.mxu0 0.0
      %383 = vmatprep.subr.mxu0 0.0
      %384 = vmatpush2.msra.mxu0 0.0
      %385 = vmatprep.subr.mxu0 0.0
      %386 = vmatpush2.msra.mxu0 0.0
      %387 = vmatprep.subr.mxu0 0.0
      %388 = vmatpush2.msra.mxu0 0.0
      %389 = vmatprep.subr.mxu0 0.0
      %390 = vmatpush2.msra.mxu0 0.0
      %391 = vmatprep.subr.mxu0 0.0
      %392 = vmatpush2.msra.mxu0 0.0
      %393 = vmatprep.subr.mxu0 0.0
      %394 = vmatpush2.msra.mxu0 0.0
      %395 = vmatprep.subr.mxu0 0.0
      %396 = vmatpush2.msra.mxu0 0.0
      %397 = vmatprep.subr.mxu0 0.0
      %398 = vmatpush2.msra.mxu0 0.0
      %399 = vmatprep.mubr.f32.mxu0 0.0
      %400 = vmatmul.mubr.f32.gmra.mxu0 %v333
      %v401 = vpop.f32.mrf.mxu0
      %v402 = vadd.f32 %v330, %v401
      %v403 = vpop.f32.mrf.mxu0
      %404 = vdwg.mxu0
      %v405 = vmax.f32 %v402, 0.0
      %v406 = vld [vmem:[%s3] sm:$0xff]
      %v407 = vld [vmem:[%s3 + $0x8] sm:$0xff]
      %v408 = vld [vmem:[%s3 + $0x10] sm:$0xff]
      %v409 = vld [vmem:[%s3 + $0x18] sm:$0xff]
      %v410 = vld [vmem:[%s3 + $0x20] sm:$0xff]
      %v411 = vld [vmem:[%s3 + $0x28] sm:$0xff]
      %v412 = vld [vmem:[%s3 + $0x30] sm:$0xff]
      %v413 = vld [vmem:[%s3 + $0x38] sm:$0xff]
      %v414 = vlaneseq
      %v415 = vshrl.u32 %v414, 7
      %v416 = vsub.s32 0, %v415
      %v417 = vrot.slane %v223, %v416
      %vm418 = vcmask 523264
      %v420 = vsel %vm418, %v405, 0
      %422 = vmatprep.subr.mxu0 0.0
      %423 = vmatpush1.msra.mxu0 0.0
      %424 = vmatprep.subr.mxu0 0.0
      %425 = vmatpush1.msra.mxu0 0.0
      %426 = vmatprep.subr.mxu0 0.0
      %427 = vmatpush1.msra.mxu0 0.0
      %428 = vmatprep.subr.mxu0 0.0
      %429 = vmatpush1.msra.mxu0 0.0
      %430 = vmatprep.subr.mxu0 0.0
      %431 = vmatpush1.msra.mxu0 0.0
      %432 = vmatprep.subr.mxu0 0.0
      %433 = vmatpush1.msra.mxu0 0.0
      %434 = vmatprep.subr.mxu0 0.0
      %435 = vmatpush1.msra.mxu0 0.0
      %436 = vmatprep.subr.mxu0 0.0
      %437 = vmatpush1.msra.mxu0 0.0
      %438 = vmatprep.subr.mxu0 0.0
      %439 = vmatpush1.msra.mxu0 %v413
      %440 = vmatprep.subr.mxu0 0.0
      %441 = vmatpush1.msra.mxu0 %v412
      %442 = vmatprep.subr.mxu0 0.0
      %443 = vmatpush1.msra.mxu0 %v411
      %444 = vmatprep.subr.mxu0 0.0
      %445 = vmatpush1.msra.mxu0 %v410
      %446 = vmatprep.subr.mxu0 0.0
      %447 = vmatpush1.msra.mxu0 %v409
      %448 = vmatprep.subr.mxu0 0.0
      %449 = vmatpush1.msra.mxu0 %v408
      %450 = vmatprep.subr.mxu0 0.0
      %451 = vmatpush1.msra.mxu0 %v407
      %452 = vmatprep.subr.mxu0 0.0
      %453 = vmatpush1.msra.mxu0 %v406
      %454 = vmatprep.subr.mxu0 0.0
      %455 = vmatpush2.msra.mxu0 0.0
      %456 = vmatprep.subr.mxu0 0.0
      %457 = vmatpush2.msra.mxu0 0.0
      %458 = vmatprep.subr.mxu0 0.0
      %459 = vmatpush2.msra.mxu0 0.0
      %460 = vmatprep.subr.mxu0 0.0
      %461 = vmatpush2.msra.mxu0 0.0
      %462 = vmatprep.subr.mxu0 0.0
      %463 = vmatpush2.msra.mxu0 0.0
      %464 = vmatprep.subr.mxu0 0.0
      %465 = vmatpush2.msra.mxu0 0.0
      %466 = vmatprep.subr.mxu0 0.0
      %467 = vmatpush2.msra.mxu0 0.0
      %468 = vmatprep.subr.mxu0 0.0
      %469 = vmatpush2.msra.mxu0 0.0
      %470 = vmatprep.subr.mxu0 0.0
      %471 = vmatpush2.msra.mxu0 0.0
      %472 = vmatprep.subr.mxu0 0.0
      %473 = vmatpush2.msra.mxu0 0.0
      %474 = vmatprep.subr.mxu0 0.0
      %475 = vmatpush2.msra.mxu0 0.0
      %476 = vmatprep.subr.mxu0 0.0
      %477 = vmatpush2.msra.mxu0 0.0
      %478 = vmatprep.subr.mxu0 0.0
      %479 = vmatpush2.msra.mxu0 0.0
      %480 = vmatprep.subr.mxu0 0.0
      %481 = vmatpush2.msra.mxu0 0.0
      %482 = vmatprep.subr.mxu0 0.0
      %483 = vmatpush2.msra.mxu0 0.0
      %484 = vmatprep.subr.mxu0 0.0
      %485 = vmatpush2.msra.mxu0 0.0
      %486 = vmatprep.mubr.f32.mxu0 0.0
      %487 = vmatmul.mubr.f32.gmra.mxu0 %v420
      %v488 = vpop.f32.mrf.mxu0
      %v489 = vadd.f32 %v417, %v488
      %v490 = vpop.f32.mrf.mxu0
      %491 = vdwg.mxu0
      %v492 = vxor.u32 %v489, 2147483648
      %v493 = vmul.f32 %v492, 1.442695
      %v494 = vpow.pop %v493
      %v495 = vadd.f32 %v494, 1.0
      %v496 = vrcp.pop %v495
      %v497 = vmul.f32 1.0, %v496
      %vm498 = vcmask 130048
      %499 = vst.msk [vmem:[%s219] sm:$0xff] %vm498, %v497
      %p500 = scmp.lt.s32.totalorder %s16, 1
      %s501 = scalar_select %p500, %s16, 1
      %s502 = smul.addr %s501, 8
      %s503 = scalar_lea.vmem %s5, %s502
      // Predicated region
      $region41: #{mlp_forward.1} parent=39 // pred_check
        %p504 = pneg %p144
      $region42: #{mlp_forward.1} parent=39 // pred_check_branch
        %506 = sbr.rel (%p504) target = $region44
      $region43: #{mlp_forward.1} parent=39 // pred_region
        _
      $region44: #{mlp_forward.1} parent=39 // pred_fallthru
        _
    $region40: #{mlp_forward.1} parent=5 // pred_fallthru
      _
    %p507 = scmp.le.s32.totalorder 2, %s11
    // Predicated region
    $region45: #{mlp_forward.1} parent=5 // pred_check
      %p508 = pneg %p507
    $region46: #{mlp_forward.1} parent=5 // pred_check_branch
      %510 = sbr.rel (%p508) target = $region48
    $region47: #{mlp_forward.1} parent=5 // pred_region
      %s511 = ssub.s32 %s11, 2
      // Predicated region
      $region49: #{mlp_forward.1} parent=47 // pred_check
        %p512 = pneg %p150
      $region50: #{mlp_forward.1} parent=47 // pred_check_branch
        %514 = sbr.rel (%p512) target = $region52
      $region51: #{mlp_forward.1} parent=47 // pred_region
        %p515 = scmp.lt.s32.totalorder %s17, 1
        %s516 = scalar_select %p515, %s17, 1
        %s517 = smul.addr %s516, 8
        %s518 = scalar_lea.vmem %s5, %s517
      $region52: #{mlp_forward.1} parent=47 // pred_fallthru
        _
    $region48: #{mlp_forward.1} parent=5 // pred_fallthru
      _
  $region6: #{mlp_forward.1} parent=0 // loop_footer
    %s15 = sadd.s32 1, %s11
  $region7: #{mlp_forward.1} parent=0 // loop_footer_branch
    %10 = sbr.rel target = $region3
  $region8: #{mlp_forward.1} parent=0 // loop_exit
    _

</llo_original>
